<compile_context>
chip_gen: v7x
topology: tpu7x:2x2x1
jax: 0.10.0
libtpu: 0.0.40
codegen_flags: <defaults>
</compile_context>

<pallas_src>
import functools

import jax
import jax.numpy as jnp
from jax.experimental import pallas as pl
from jax.experimental.pallas import tpu as pltpu

OUT = 10            # real number of classes
OUT_PAD = 128       # lane-dense padded logits width
HID0 = 128          # fc0 output width
HID1 = 64           # fc1 output width (zero-padded to HID1_PAD)
HID1_PAD = 128      # lane-dense padded fc1 width


def _round_up(n, m):
    return ((n + m - 1) // m) * m


def _mlp_kernel(x_ref, w0_ref, b0_ref, w1_ref, b1_ref, w2_ref, b2_ref, o_ref):
    # x tile arrives in its HBM dtype (f32 here); cast to bf16 in-kernel so there is
    # no extra wrapper-side HBM pad/cast pass.
    x = x_ref[...].astype(jnp.bfloat16)

    # fc0 + relu  (bf16 MXU matmul, f32 accumulation, f32 elementwise)
    h0 = jnp.dot(x, w0_ref[...], preferred_element_type=jnp.float32) + b0_ref[...]
    h0 = jnp.maximum(h0, 0.0)

    # fc1 + relu  (hidden 64 -> 128 zero-padded: relu(0 + 0) = 0, fully lane-dense)
    h1 = jnp.dot(h0.astype(jnp.bfloat16), w1_ref[...],
                 preferred_element_type=jnp.float32) + b1_ref[...]
    h1 = jnp.maximum(h1, 0.0)

    # fc2  (10 -> 128 lanes; padded bias lanes are -1e30 so they vanish from the LSE)
    logits = jnp.dot(h1.astype(jnp.bfloat16), w2_ref[...],
                     preferred_element_type=jnp.float32) + b2_ref[...]

    # numerically stable log_softmax over the padded 128 lanes (f32 math)
    m = jnp.max(logits, axis=1, keepdims=True)
    shifted = logits - m
    lse = jnp.log(jnp.sum(jnp.exp(shifted), axis=1, keepdims=True))
    o_ref[...] = (shifted - lse).astype(o_ref.dtype)


def prepare_params(params):
    """One-time param prep (hoisted out of the per-call forward):
    bf16 matmul weights, hidden 64->128 zero padding, fc2 10->128 lane padding."""
    w0, b0, w1, b1, w2, b2 = params
    w0b = w0.astype(jnp.bfloat16)                                       # (D, 128)
    b0f = b0.reshape(1, HID0).astype(jnp.float32)
    w1p = jnp.zeros((HID0, HID1_PAD), jnp.bfloat16).at[:, :HID1].set(
        w1.astype(jnp.bfloat16))
    b1p = jnp.zeros((1, HID1_PAD), jnp.float32).at[:, :HID1].set(
        b1.reshape(1, HID1).astype(jnp.float32))
    w2p = jnp.zeros((HID1_PAD, OUT_PAD), jnp.bfloat16).at[:HID1, :OUT].set(
        w2.astype(jnp.bfloat16))
    b2p = jnp.full((1, OUT_PAD), -1e30, jnp.float32).at[:, :OUT].set(
        b2.reshape(1, OUT).astype(jnp.float32))
    return (w0b, b0f, w1p, b1p, w2p, b2p)


@functools.partial(jax.jit, static_argnames=("tm",))
def model_e_forward(x, prepared, *, tm=1024):
    """x: (B, ...) with prod(...) == image_size (equivalent to x.view(-1, image_size)).
    prepared: output of prepare_params()."""
    w0b, b0f, w1p, b1p, w2p, b2p = prepared
    D = w0b.shape[0]
    B = x.size // D

    # glue only: x.view(-1, image_size); no pad, no wrapper-side dtype cast
    x2d = x.reshape(B, D)

    # Batch tile: large to amortize ~0.35us/grid-step overhead, but shrink so there
    # are >=2 roughly even tiles whenever B allows (v7x has 2 TensorCores). Keep it a
    # multiple of 16 (bf16 sublanes).
    tm_eff = max(16, min(tm, _round_up(-(-B // 2), 16)))
    n_tiles = -(-B // tm_eff)            # ragged last block handled by Pallas

    grid_spec = pltpu.PrefetchScalarGridSpec(
        num_scalar_prefetch=0,
        grid=(n_tiles,),
        in_specs=[
            pl.BlockSpec((tm_eff, D), lambda i: (i, 0)),      # x: tiled over batch
            pl.BlockSpec(w0b.shape, lambda i: (0, 0)),        # weights/biases VMEM-resident
            pl.BlockSpec(b0f.shape, lambda i: (0, 0)),
            pl.BlockSpec(w1p.shape, lambda i: (0, 0)),
            pl.BlockSpec(b1p.shape, lambda i: (0, 0)),
            pl.BlockSpec(w2p.shape, lambda i: (0, 0)),
            pl.BlockSpec(b2p.shape, lambda i: (0, 0)),
        ],
        out_specs=pl.BlockSpec((tm_eff, OUT_PAD), lambda i: (i, 0)),
    )

    # advisory cost estimate reflecting the actual DMA volume
    flops = 2 * B * (D * HID0 + HID0 * HID1_PAD + HID1_PAD * OUT_PAD)
    transcendentals = B * (OUT_PAD + 1)          # exp over lanes + log per row
    bytes_accessed = (
        B * D * x.dtype.itemsize                                  # x as stored in HBM
        + (w0b.size + w1p.size + w2p.size) * 2                    # bf16 weights
        + (b0f.size + b1p.size + b2p.size) * 4                    # f32 biases
        + B * OUT_PAD * 4                                         # f32 output
    )
    cost = pl.CostEstimate(flops=flops, transcendentals=transcendentals,
                           bytes_accessed=bytes_accessed)

    out = pl.pallas_call(
        _mlp_kernel,
        out_shape=jax.ShapeDtypeStruct((B, OUT_PAD), jnp.float32),
        grid_spec=grid_spec,
        compiler_params=pltpu.CompilerParams(
            dimension_semantics=("parallel",),       # shard batch tiles across TCs (v7x)
            vmem_limit_bytes=48 * 1024 * 1024,       # headroom over v5e's 16 MiB default
        ),
        cost_estimate=cost,
    )(x2d, w0b, b0f, w1p, b1p, w2p, b2p)

    # drop the 118 padded logit lanes (per-row log_softmax, so no cross-row masking needed)
    return out[:, :OUT]


def init_params(image_size, key):
    """Deterministic init mimicking torch.nn.Linear default: U(-1/sqrt(fan_in), +1/sqrt(fan_in)).
    Only fc0, fc1, fc2 are used in forward (fc3/fc4/fc5 are dead in the PyTorch module).
    Weights stored as (in_features, out_features) so the kernel computes y = x @ W + b."""
    def linear(key, fan_in, fan_out):
        kw, kb = jax.random.split(key)
        bound = 1.0 / jnp.sqrt(fan_in)
        w = jax.random.uniform(kw, (fan_in, fan_out), jnp.float32, -bound, bound)
        b = jax.random.uniform(kb, (1, fan_out), jnp.float32, -bound, bound)
        return w, b

    k0, k1, k2 = jax.random.split(key, 3)
    w0, b0 = linear(k0, image_size, HID0)
    w1, b1 = linear(k1, HID0, HID1)
    w2, b2 = linear(k2, HID1, OUT)
    return (w0, b0, w1, b1, w2, b2)


def _reference_forward(x, params):
    """Pure-JAX f32 reference (matches the PyTorch forward)."""
    w0, b0, w1, b1, w2, b2 = params
    B = x.size // w0.shape[0]
    x2d = x.reshape(B, w0.shape[0])
    h0 = jnp.maximum(x2d @ w0 + b0, 0.0)
    h1 = jnp.maximum(h0 @ w1 + b1, 0.0)
    logits = h1 @ w2 + b2
    return jax.nn.log_softmax(logits, axis=1)


if __name__ == "__main__":
    key = jax.random.PRNGKey(0)
    k_x, k_p, k_x2 = jax.random.split(key, 3)

    B, C, H, W = 2, 1, 16, 16           # image_size = C*H*W = 256
    image_size = C * H * W

    params = init_params(image_size, k_p)
    prepared = prepare_params(params)   # one-time bf16 cast + padding (outside the jit)

    # primary check (tiny batch, single tile)
    x = jax.random.normal(k_x, (B, C, H, W), jnp.float32)
    out = jax.block_until_ready(model_e_forward(x, prepared))
    assert out.shape == (B, OUT)
    assert jnp.allclose(jnp.exp(out).sum(axis=1), 1.0, atol=1e-4)   # log_softmax sanity
    ref = _reference_forward(x, params)
    assert jnp.allclose(out, ref, atol=5e-2), float(jnp.max(jnp.abs(out - ref)))

    # multi-tile / ragged-last-block check (B=48 -> 2 tiles of 32, last one partial)
    x_big = jax.random.normal(k_x2, (48, C, H, W), jnp.float32)
    out_big = jax.block_until_ready(model_e_forward(x_big, prepared))
    assert out_big.shape == (48, OUT)
    ref_big = _reference_forward(x_big, params)
    assert jnp.allclose(out_big, ref_big, atol=5e-2), float(jnp.max(jnp.abs(out_big - ref_big)))

    print("KERNEL_OK")
</pallas_src>

<mosaic_0001>
module attributes {stable_mosaic.version = 11 : i64} {
  func.func @_mlp_kernel(%arg0: i32, %arg1: memref<16x256xf32, #tpu.memory_space<vmem>>, %arg2: memref<256x128xbf16, #tpu.memory_space<vmem>>, %arg3: memref<1x128xf32, #tpu.memory_space<vmem>>, %arg4: memref<128x128xbf16, #tpu.memory_space<vmem>>, %arg5: memref<1x128xf32, #tpu.memory_space<vmem>>, %arg6: memref<128x128xbf16, #tpu.memory_space<vmem>>, %arg7: memref<1x128xf32, #tpu.memory_space<vmem>>, %arg8: memref<16x128xf32, #tpu.memory_space<vmem>>) attributes {dimension_semantics = [#tpu.dimension_semantics<parallel>], iteration_bounds = array<i64: 1>, scalar_prefetch = 0 : i64, scratch_operands = 0 : i64, tpu.core_type = #tpu.core_type<tc>, window_params = [{transform_indices = @transform_0, window_bounds = array<i64: 16, 256>}, {pipeline_mode = #tpu.pipeline_mode<synchronous>, transform_indices = @transform_1, window_bounds = array<i64: 256, 128>}, {pipeline_mode = #tpu.pipeline_mode<synchronous>, transform_indices = @transform_2, window_bounds = array<i64: 1, 128>}, {pipeline_mode = #tpu.pipeline_mode<synchronous>, transform_indices = @transform_3, window_bounds = array<i64: 128, 128>}, {pipeline_mode = #tpu.pipeline_mode<synchronous>, transform_indices = @transform_4, window_bounds = array<i64: 1, 128>}, {pipeline_mode = #tpu.pipeline_mode<synchronous>, transform_indices = @transform_5, window_bounds = array<i64: 128, 128>}, {pipeline_mode = #tpu.pipeline_mode<synchronous>, transform_indices = @transform_6, window_bounds = array<i64: 1, 128>}, {transform_indices = @transform_7, window_bounds = array<i64: 16, 128>}]} {
    %c0 = arith.constant 0 : index
    %c0_0 = arith.constant 0 : index
    %0 = vector.load %arg1[%c0, %c0_0] : memref<16x256xf32, #tpu.memory_space<vmem>>, vector<16x256xf32>
    %1 = arith.truncf %0 : vector<16x256xf32> to vector<16x256xbf16>
    %c0_1 = arith.constant 0 : index
    %c0_2 = arith.constant 0 : index
    %2 = vector.load %arg2[%c0_1, %c0_2] : memref<256x128xbf16, #tpu.memory_space<vmem>>, vector<256x128xbf16>
    %cst = arith.constant dense<0.000000e+00> : vector<16x128xf32>
    %3 = tpu.matmul %1, %2, %cst {dimension_numbers = #tpu.dot_dimension_numbers<[1], [0], [0], [1], [0, 0, 1, 1], [], []>} : vector<16x256xbf16>, vector<256x128xbf16>, vector<16x128xf32> -> vector<16x128xf32>
    %c0_3 = arith.constant 0 : index
    %c0_4 = arith.constant 0 : index
    %4 = vector.load %arg3[%c0_3, %c0_4] : memref<1x128xf32, #tpu.memory_space<vmem>>, vector<1x128xf32>
    %5 = vector.broadcast %4 : vector<1x128xf32> to vector<16x128xf32>
    %6 = arith.addf %3, %5 : vector<16x128xf32>
    %cst_5 = arith.constant 0.000000e+00 : f32
    %7 = vector.broadcast %cst_5 : f32 to vector<16x128xf32>
    %8 = arith.maximumf %6, %7 : vector<16x128xf32>
    %9 = arith.truncf %8 : vector<16x128xf32> to vector<16x128xbf16>
    %c0_6 = arith.constant 0 : index
    %c0_7 = arith.constant 0 : index
    %10 = vector.load %arg4[%c0_6, %c0_7] : memref<128x128xbf16, #tpu.memory_space<vmem>>, vector<128x128xbf16>
    %cst_8 = arith.constant dense<0.000000e+00> : vector<16x128xf32>
    %11 = tpu.matmul %9, %10, %cst_8 {dimension_numbers = #tpu.dot_dimension_numbers<[1], [0], [0], [1], [0, 0, 1, 1], [], []>} : vector<16x128xbf16>, vector<128x128xbf16>, vector<16x128xf32> -> vector<16x128xf32>
    %c0_9 = arith.constant 0 : index
    %c0_10 = arith.constant 0 : index
    %12 = vector.load %arg5[%c0_9, %c0_10] : memref<1x128xf32, #tpu.memory_space<vmem>>, vector<1x128xf32>
    %13 = vector.broadcast %12 : vector<1x128xf32> to vector<16x128xf32>
    %14 = arith.addf %11, %13 : vector<16x128xf32>
    %cst_11 = arith.constant 0.000000e+00 : f32
    %15 = vector.broadcast %cst_11 : f32 to vector<16x128xf32>
    %16 = arith.maximumf %14, %15 : vector<16x128xf32>
    %17 = arith.truncf %16 : vector<16x128xf32> to vector<16x128xbf16>
    %c0_12 = arith.constant 0 : index
    %c0_13 = arith.constant 0 : index
    %18 = vector.load %arg6[%c0_12, %c0_13] : memref<128x128xbf16, #tpu.memory_space<vmem>>, vector<128x128xbf16>
    %cst_14 = arith.constant dense<0.000000e+00> : vector<16x128xf32>
    %19 = tpu.matmul %17, %18, %cst_14 {dimension_numbers = #tpu.dot_dimension_numbers<[1], [0], [0], [1], [0, 0, 1, 1], [], []>} : vector<16x128xbf16>, vector<128x128xbf16>, vector<16x128xf32> -> vector<16x128xf32>
    %c0_15 = arith.constant 0 : index
    %c0_16 = arith.constant 0 : index
    %20 = vector.load %arg7[%c0_15, %c0_16] : memref<1x128xf32, #tpu.memory_space<vmem>>, vector<1x128xf32>
    %21 = vector.broadcast %20 : vector<1x128xf32> to vector<16x128xf32>
    %22 = arith.addf %19, %21 : vector<16x128xf32>
    %cst_17 = arith.constant dense<0xFF800000> : vector<16xf32>
    %23 = vector.multi_reduction <maximumf>, %22, %cst_17 [1] : vector<16x128xf32> to vector<16xf32>
    %24 = vector.shape_cast %23 : vector<16xf32> to vector<16x1xf32>
    %25 = vector.broadcast %24 : vector<16x1xf32> to vector<16x128xf32>
    %26 = arith.subf %22, %25 : vector<16x128xf32>
    %27 = math.exp %26 : vector<16x128xf32>
    %cst_18 = arith.constant dense<0.000000e+00> : vector<16xf32>
    %28 = vector.multi_reduction <add>, %27, %cst_18 [1] : vector<16x128xf32> to vector<16xf32>
    %29 = vector.shape_cast %28 : vector<16xf32> to vector<16x1xf32>
    %30 = math.log %29 : vector<16x1xf32>
    %31 = vector.broadcast %30 : vector<16x1xf32> to vector<16x128xf32>
    %32 = arith.subf %26, %31 : vector<16x128xf32>
    %c0_19 = arith.constant 0 : index
    %c0_20 = arith.constant 0 : index
    %33 = vector.load %arg8[%c0_19, %c0_20] : memref<16x128xf32, #tpu.memory_space<vmem>>, vector<16x128xf32>
    tpu.vector_store %arg8[%c0_19, %c0_20], %32 {strides = array<i32>} : memref<16x128xf32, #tpu.memory_space<vmem>>, vector<16x128xf32>,
    return
  }
  func.func @transform_0(%arg0: i32) -> (i32, i32) {
    %c0_i32 = arith.constant 0 : i32
    %c0_i32_0 = arith.constant 0 : i32
    return %arg0, %c0_i32 : i32, i32
  }
  func.func @transform_1(%arg0: i32) -> (i32, i32) {
    %c0_i32 = arith.constant 0 : i32
    %c0_i32_0 = arith.constant 0 : i32
    %c0_i32_1 = arith.constant 0 : i32
    return %c0_i32, %c0_i32_0 : i32, i32
  }
  func.func @transform_2(%arg0: i32) -> (i32, i32) {
    %c0_i32 = arith.constant 0 : i32
    %c0_i32_0 = arith.constant 0 : i32
    %c0_i32_1 = arith.constant 0 : i32
    return %c0_i32, %c0_i32_0 : i32, i32
  }
  func.func @transform_3(%arg0: i32) -> (i32, i32) {
    %c0_i32 = arith.constant 0 : i32
    %c0_i32_0 = arith.constant 0 : i32
    %c0_i32_1 = arith.constant 0 : i32
    return %c0_i32, %c0_i32_0 : i32, i32
  }
  func.func @transform_4(%arg0: i32) -> (i32, i32) {
    %c0_i32 = arith.constant 0 : i32
    %c0_i32_0 = arith.constant 0 : i32
    %c0_i32_1 = arith.constant 0 : i32
    return %c0_i32, %c0_i32_0 : i32, i32
  }
  func.func @transform_5(%arg0: i32) -> (i32, i32) {
    %c0_i32 = arith.constant 0 : i32
    %c0_i32_0 = arith.constant 0 : i32
    %c0_i32_1 = arith.constant 0 : i32
    return %c0_i32, %c0_i32_0 : i32, i32
  }
  func.func @transform_6(%arg0: i32) -> (i32, i32) {
    %c0_i32 = arith.constant 0 : i32
    %c0_i32_0 = arith.constant 0 : i32
    %c0_i32_1 = arith.constant 0 : i32
    return %c0_i32, %c0_i32_0 : i32, i32
  }
  func.func @transform_7(%arg0: i32) -> (i32, i32) {
    %c0_i32 = arith.constant 0 : i32
    %c0_i32_0 = arith.constant 0 : i32
    return %arg0, %c0_i32 : i32, i32
  }
}

</mosaic_0001>

<llo_original>
// kernel: model_e_forward.1
$region0: #{model_e_forward.1}
  #allocation0 [shape = 'u32[]', space=smem, size = 0x4, offset = 0x4, fixed_abs, tag = 'smem constant byte address 0x4 - core index']
  #allocation1 [shape = 'u32[144,128]{1,0:T(1,128)}', space=vmem, size = 0x12000, scoped, tag = 'internal scratch']
  %s0 = inlined_call_operand.vmem [shape: f32[2,256], index: 0, kind: input, shape index: {}]
  %s1 = inlined_call_operand.hbm [shape: bf16[256,128], index: 1, kind: input, shape index: {}]
  %s2 = inlined_call_operand.vmem [shape: f32[1,128], index: 2, kind: input, shape index: {}]
  %s3 = inlined_call_operand.hbm [shape: bf16[128,128], index: 3, kind: input, shape index: {}]
  %s4 = inlined_call_operand.vmem [shape: f32[1,128], index: 4, kind: input, shape index: {}]
  %s5 = inlined_call_operand.hbm [shape: bf16[128,128], index: 5, kind: input, shape index: {}]
  %s6 = inlined_call_operand.vmem [shape: f32[1,128], index: 6, kind: input, shape index: {}]
  %s7 = inlined_call_operand.hbm [shape: f32[2,128], index: 7, kind: output, shape index: {}]
  %s8 = sld [smem:[#allocation0]]
  $region50: #{model_e_forward.1} parent=0
    _
  %s10 = ssub.s32 1, %s8
  %s11 = scalar_select 0, %s10, %s8
  $region1: #{model_e_forward.1} parent=0
    #allocation2 [shape = 'u8[65536]{0}', space=vmem, size = 0x10000, scoped, tag = 'input window, operand 1, single buffered']
    #allocation3 [shape = 's32[1]{0}', space=sflag, size = 0x4, scoped, tag = 'scoped memory for model_e_forward.1']
    #allocation4 [shape = 's32[1]{0}', space=sflag, size = 0x4, scoped, tag = 'scoped memory for model_e_forward.1']
    #allocation5 [shape = 'u8[32768]{0}', space=vmem, size = 0x8000, scoped, tag = 'input window, operand 3, single buffered']
    #allocation6 [shape = 's32[1]{0}', space=sflag, size = 0x4, scoped, tag = 'scoped memory for model_e_forward.1']
    #allocation7 [shape = 'u8[32768]{0}', space=vmem, size = 0x8000, scoped, tag = 'input window, operand 5, single buffered']
    #allocation8 [shape = 'u8[8192]{0}', space=vmem, size = 0x2000, scoped, tag = 'output window, operand 0, single buffered']
    %12 = vsyncpa [#allocation3], 0
    %13 = vsyncpa [#allocation6], 0
    %14 = vsyncpa [#allocation4], 0
    // Predicated region
    $region2: #{model_e_forward.1} parent=1 // pred_check
      _
    $region3: #{model_e_forward.1} parent=1 // pred_check_branch
      %16 = sbr.rel (0) target = $region5
    $region4: #{model_e_forward.1} parent=1 // pred_region
      _
    $region5: #{model_e_forward.1} parent=1 // pred_fallthru
      _
    // Predicated region
    $region6: #{model_e_forward.1} parent=1 // pred_check
      _
    $region7: #{model_e_forward.1} parent=1 // pred_check_branch
      %18 = sbr.rel (0) target = $region9
    $region8: #{model_e_forward.1} parent=1 // pred_region
      %s20 = ssub.s32 2048, 2048
      %21 = vsyncadd [#allocation3], %s20
      %s22 = sshll.u32 [#allocation2], 4
      %s23 = int_to_ptr.vmem [resolvable:$true] %s22
      %28 = dma.hbm_to_vmem [thread:$0]  %s1, 2048, %s23, [#allocation3], 64, 64, 4
    $region9: #{model_e_forward.1} parent=1 // pred_fallthru
      _
    // Predicated region
    $region10: #{model_e_forward.1} parent=1 // pred_check
      _
    $region11: #{model_e_forward.1} parent=1 // pred_check_branch
      %30 = sbr.rel (0) target = $region13
    $region12: #{model_e_forward.1} parent=1 // pred_region
      _
    $region13: #{model_e_forward.1} parent=1 // pred_fallthru
      _
    // Predicated region
    $region14: #{model_e_forward.1} parent=1 // pred_check
      _
    $region15: #{model_e_forward.1} parent=1 // pred_check_branch
      %32 = sbr.rel (0) target = $region17
    $region16: #{model_e_forward.1} parent=1 // pred_region
      %s34 = ssub.s32 1024, 1024
      %35 = vsyncadd [#allocation6], %s34
      %s36 = sshll.u32 [#allocation5], 4
      %s37 = int_to_ptr.vmem [resolvable:$true] %s36
      %42 = dma.hbm_to_vmem [thread:$0]  %s3, 1024, %s37, [#allocation6], 64, 64, 4
    $region17: #{model_e_forward.1} parent=1 // pred_fallthru
      _
    // Predicated region
    $region18: #{model_e_forward.1} parent=1 // pred_check
      _
    $region19: #{model_e_forward.1} parent=1 // pred_check_branch
      %44 = sbr.rel (0) target = $region21
    $region20: #{model_e_forward.1} parent=1 // pred_region
      _
    $region21: #{model_e_forward.1} parent=1 // pred_fallthru
      _
    // Predicated region
    $region22: #{model_e_forward.1} parent=1 // pred_check
      _
    $region23: #{model_e_forward.1} parent=1 // pred_check_branch
      %46 = sbr.rel (0) target = $region25
    $region24: #{model_e_forward.1} parent=1 // pred_region
      %s48 = ssub.s32 1024, 1024
      %49 = vsyncadd [#allocation6], %s48
      %s50 = sshll.u32 [#allocation7], 4
      %s51 = int_to_ptr.vmem [resolvable:$true] %s50
      %56 = dma.hbm_to_vmem [thread:$0]  %s5, 1024, %s51, [#allocation6], 64, 64, 4
    $region25: #{model_e_forward.1} parent=1 // pred_fallthru
      _
    // Predicated region
    $region26: #{model_e_forward.1} parent=1 // pred_check
      _
    $region27: #{model_e_forward.1} parent=1 // pred_check_branch
      %58 = sbr.rel (0) target = $region29
    $region28: #{model_e_forward.1} parent=1 // pred_region
      _
    $region29: #{model_e_forward.1} parent=1 // pred_fallthru
      _
    // Predicated region
    $region30: #{model_e_forward.1} parent=1 // pred_check
      _
    $region31: #{model_e_forward.1} parent=1 // pred_check_branch
      %60 = sbr.rel (0) target = $region33
    $region32: #{model_e_forward.1} parent=1 // pred_region
      %61 = dma.done [#allocation3], 2048
    $region33: #{model_e_forward.1} parent=1 // pred_fallthru
      _
    // Predicated region
    $region34: #{model_e_forward.1} parent=1 // pred_check
      _
    $region35: #{model_e_forward.1} parent=1 // pred_check_branch
      %63 = sbr.rel (0) target = $region37
    $region36: #{model_e_forward.1} parent=1 // pred_region
      %64 = dma.done [#allocation6], 1024
    $region37: #{model_e_forward.1} parent=1 // pred_fallthru
      _
    // Predicated region
    $region38: #{model_e_forward.1} parent=1 // pred_check
      _
    $region39: #{model_e_forward.1} parent=1 // pred_check_branch
      %66 = sbr.rel (0) target = $region41
    $region40: #{model_e_forward.1} parent=1 // pred_region
      %67 = dma.done [#allocation6], 1024
    $region41: #{model_e_forward.1} parent=1 // pred_fallthru
      _
    %v69 = vld [vmem:[%s0] sm:$0xf]
    %v70 = vld [vmem:[%s0 + $0x4] sm:$0xf]
    %v71 = vld [vmem:[%s0 + $0x8] sm:$0xf]
    %v72 = vld [vmem:[%s0 + $0xc] sm:$0xf]
    %v73 = vld [vmem:[%s0 + $0x10] sm:$0xf]
    %v74 = vld [vmem:[%s0 + $0x14] sm:$0xf]
    %v75 = vld [vmem:[%s0 + $0x18] sm:$0xf]
    %v76 = vld [vmem:[%s0 + $0x1c] sm:$0xf]
    %v85 = vcombine.low %v69, %v70
    %v86 = vcombine.low %v71, %v72
    %v88 = vunpack.c.l.s4 1983009808
    %v89 = vunpack.c.0.s8 %v88
    %v90 = vlaneseq
    %v91 = vshrl.u32 %v90, 7
    %v92 = vsub.s32 %v89, %v91
    %v93 = vrot.slane %v85, %v92
    %v95 = vunpack.c.l.s4 1983009808
    %v96 = vunpack.c.0.s8 %v95
    %v97 = vlaneseq
    %v98 = vshrl.u32 %v97, 7
    %v99 = vsub.s32 %v96, %v98
    %v100 = vrot.slane %v86, %v99
    %v101 = vcombine.low %v93, %v100
    %v102 = vcombine.high %v93, %v100
    %v103 = vcombine.low %v73, %v74
    %v104 = vcombine.low %v75, %v76
    %v106 = vunpack.c.l.s4 1983009808
    %v107 = vunpack.c.0.s8 %v106
    %v108 = vlaneseq
    %v109 = vshrl.u32 %v108, 7
    %v110 = vsub.s32 %v107, %v109
    %v111 = vrot.slane %v103, %v110
    %v113 = vunpack.c.l.s4 1983009808
    %v114 = vunpack.c.0.s8 %v113
    %v115 = vlaneseq
    %v116 = vshrl.u32 %v115, 7
    %v117 = vsub.s32 %v114, %v116
    %v118 = vrot.slane %v104, %v117
    %v119 = vcombine.low %v111, %v118
    %v120 = vcombine.high %v111, %v118
    %v125 = vpack.c.bf16 %v119, %v101
    %v126 = vpack.c.bf16 %v120, %v102
    %v127 = vld [vmem:[#allocation2] sm:$0xf]
    %v128 = vld [vmem:[#allocation2 + $0x4] sm:$0xf]
    %v129 = vld [vmem:[#allocation2 + $0x8] sm:$0xf]
    %v130 = vld [vmem:[#allocation2 + $0xc] sm:$0xf]
    %v131 = vld [vmem:[#allocation2 + $0x10] sm:$0xf]
    %v132 = vld [vmem:[#allocation2 + $0x14] sm:$0xf]
    %v133 = vld [vmem:[#allocation2 + $0x18] sm:$0xf]
    %v134 = vld [vmem:[#allocation2 + $0x1c] sm:$0xf]
    %v135 = vld [vmem:[#allocation2 + $0x20] sm:$0xf]
    %v136 = vld [vmem:[#allocation2 + $0x24] sm:$0xf]
    %v137 = vld [vmem:[#allocation2 + $0x28] sm:$0xf]
    %v138 = vld [vmem:[#allocation2 + $0x2c] sm:$0xf]
    %v139 = vld [vmem:[#allocation2 + $0x30] sm:$0xf]
    %v140 = vld [vmem:[#allocation2 + $0x34] sm:$0xf]
    %v141 = vld [vmem:[#allocation2 + $0x38] sm:$0xf]
    %v142 = vld [vmem:[#allocation2 + $0x3c] sm:$0xf]
    %v143 = vld [vmem:[#allocation2 + $0x40] sm:$0xf]
    %v144 = vld [vmem:[#allocation2 + $0x44] sm:$0xf]
    %v145 = vld [vmem:[#allocation2 + $0x48] sm:$0xf]
    %v146 = vld [vmem:[#allocation2 + $0x4c] sm:$0xf]
    %v147 = vld [vmem:[#allocation2 + $0x50] sm:$0xf]
    %v148 = vld [vmem:[#allocation2 + $0x54] sm:$0xf]
    %v149 = vld [vmem:[#allocation2 + $0x58] sm:$0xf]
    %v150 = vld [vmem:[#allocation2 + $0x5c] sm:$0xf]
    %v151 = vld [vmem:[#allocation2 + $0x60] sm:$0xf]
    %v152 = vld [vmem:[#allocation2 + $0x64] sm:$0xf]
    %v153 = vld [vmem:[#allocation2 + $0x68] sm:$0xf]
    %v154 = vld [vmem:[#allocation2 + $0x6c] sm:$0xf]
    %v155 = vld [vmem:[#allocation2 + $0x70] sm:$0xf]
    %v156 = vld [vmem:[#allocation2 + $0x74] sm:$0xf]
    %v157 = vld [vmem:[#allocation2 + $0x78] sm:$0xf]
    %v158 = vld [vmem:[#allocation2 + $0x7c] sm:$0xf]
    %v159 = vld [vmem:[%s2] sm:$0x1]
    %v161 = vlaneseq
    %v162 = vshrl.u32 %v161, 7
    %v163 = vsub.s32 0, %v162
    %v164 = vrot.slane %v159, %v163
    %v198 = vunpack.c.l.b16 %v127
    %v199 = vunpack.c.l.b16 %v128
    %v200 = vunpack.c.l.b16 %v129
    %v201 = vunpack.c.l.b16 %v130
    %v202 = vunpack.c.l.b16 %v131
    %v203 = vunpack.c.l.b16 %v132
    %v204 = vunpack.c.l.b16 %v133
    %v205 = vunpack.c.l.b16 %v134
    %v206 = vunpack.c.l.b16 %v135
    %v207 = vunpack.c.l.b16 %v136
    %v208 = vunpack.c.l.b16 %v137
    %v209 = vunpack.c.l.b16 %v138
    %v210 = vunpack.c.l.b16 %v139
    %v211 = vunpack.c.l.b16 %v140
    %v212 = vunpack.c.l.b16 %v141
    %v213 = vunpack.c.l.b16 %v142
    %v214 = vunpack.c.l.b16 %v143
    %v215 = vunpack.c.l.b16 %v144
    %v216 = vunpack.c.l.b16 %v145
    %v217 = vunpack.c.l.b16 %v146
    %v218 = vunpack.c.l.b16 %v147
    %v219 = vunpack.c.l.b16 %v148
    %v220 = vunpack.c.l.b16 %v149
    %v221 = vunpack.c.l.b16 %v150
    %v222 = vunpack.c.l.b16 %v151
    %v223 = vunpack.c.l.b16 %v152
    %v224 = vunpack.c.l.b16 %v153
    %v225 = vunpack.c.l.b16 %v154
    %v226 = vunpack.c.l.b16 %v155
    %v227 = vunpack.c.l.b16 %v156
    %v228 = vunpack.c.l.b16 %v157
    %v229 = vunpack.c.l.b16 %v158
    %v230 = vpack.c.b16 %v199, %v198
    %v231 = vpack.c.b16 %v201, %v200
    %v232 = vpack.c.b16 %v203, %v202
    %v233 = vpack.c.b16 %v205, %v204
    %v234 = vpack.c.b16 %v207, %v206
    %v235 = vpack.c.b16 %v209, %v208
    %v236 = vpack.c.b16 %v211, %v210
    %v237 = vpack.c.b16 %v213, %v212
    %v238 = vpack.c.b16 %v215, %v214
    %v239 = vpack.c.b16 %v217, %v216
    %v240 = vpack.c.b16 %v219, %v218
    %v241 = vpack.c.b16 %v221, %v220
    %v242 = vpack.c.b16 %v223, %v222
    %v243 = vpack.c.b16 %v225, %v224
    %v244 = vpack.c.b16 %v227, %v226
    %v245 = vpack.c.b16 %v229, %v228
    %262 = vmatprep.subr.bf16.mxu0 0
    %263 = vmatpush1.bf16.msra.mxu0 %v230
    %264 = vmatprep.subr.bf16.mxu0 0
    %265 = vmatpush1.bf16.msra.mxu0 %v231
    %266 = vmatprep.subr.bf16.mxu0 0
    %267 = vmatpush1.bf16.msra.mxu0 %v232
    %268 = vmatprep.subr.bf16.mxu0 0
    %269 = vmatpush1.bf16.msra.mxu0 %v233
    %270 = vmatprep.subr.bf16.mxu0 0
    %271 = vmatpush1.bf16.msra.mxu0 %v234
    %272 = vmatprep.subr.bf16.mxu0 0
    %273 = vmatpush1.bf16.msra.mxu0 %v235
    %274 = vmatprep.subr.bf16.mxu0 0
    %275 = vmatpush1.bf16.msra.mxu0 %v236
    %276 = vmatprep.subr.bf16.mxu0 0
    %277 = vmatpush1.bf16.msra.mxu0 %v237
    %278 = vmatprep.subr.bf16.mxu0 0
    %279 = vmatpush1.bf16.msra.mxu0 %v238
    %280 = vmatprep.subr.bf16.mxu0 0
    %281 = vmatpush1.bf16.msra.mxu0 %v239
    %282 = vmatprep.subr.bf16.mxu0 0
    %283 = vmatpush1.bf16.msra.mxu0 %v240
    %284 = vmatprep.subr.bf16.mxu0 0
    %285 = vmatpush1.bf16.msra.mxu0 %v241
    %286 = vmatprep.subr.bf16.mxu0 0
    %287 = vmatpush1.bf16.msra.mxu0 %v242
    %288 = vmatprep.subr.bf16.mxu0 0
    %289 = vmatpush1.bf16.msra.mxu0 %v243
    %290 = vmatprep.subr.bf16.mxu0 0
    %291 = vmatpush1.bf16.msra.mxu0 %v244
    %292 = vmatprep.subr.bf16.mxu0 0
    %293 = vmatpush1.bf16.msra.mxu0 %v245
    %294 = vmatprep.mubr.bf16.mxu0 %v126
    %295 = vmatmul.mubr.bf16.gmra.mrb[0].mxu0 %v125
    %v296 = vpop.f32.mrb[0].mxu0
    %v297 = vadd.f32 %v164, %v296
    %v298 = vpop.f32.mrb[0].mxu0
    %v299 = vpop.f32.mrb[0].mxu0
    %v300 = vadd.f32 %v164, %v299
    %v301 = vpop.f32.mrb[0].mxu0
    %302 = vdwg.mxu0
    %v303 = vmax.f32 %v297, 0.0
    %v304 = vmax.f32 %v300, 0.0
    %v305 = vpack.c.bf16 %v304, %v303
    %v306 = vld [vmem:[#allocation5] sm:$0xf]
    %v307 = vld [vmem:[#allocation5 + $0x4] sm:$0xf]
    %v308 = vld [vmem:[#allocation5 + $0x8] sm:$0xf]
    %v309 = vld [vmem:[#allocation5 + $0xc] sm:$0xf]
    %v310 = vld [vmem:[#allocation5 + $0x10] sm:$0xf]
    %v311 = vld [vmem:[#allocation5 + $0x14] sm:$0xf]
    %v312 = vld [vmem:[#allocation5 + $0x18] sm:$0xf]
    %v313 = vld [vmem:[#allocation5 + $0x1c] sm:$0xf]
    %v314 = vld [vmem:[#allocation5 + $0x20] sm:$0xf]
    %v315 = vld [vmem:[#allocation5 + $0x24] sm:$0xf]
    %v316 = vld [vmem:[#allocation5 + $0x28] sm:$0xf]
    %v317 = vld [vmem:[#allocation5 + $0x2c] sm:$0xf]
    %v318 = vld [vmem:[#allocation5 + $0x30] sm:$0xf]
    %v319 = vld [vmem:[#allocation5 + $0x34] sm:$0xf]
    %v320 = vld [vmem:[#allocation5 + $0x38] sm:$0xf]
    %v321 = vld [vmem:[#allocation5 + $0x3c] sm:$0xf]
    %v322 = vld [vmem:[%s4] sm:$0x1]
    %v324 = vlaneseq
    %v325 = vshrl.u32 %v324, 7
    %v326 = vsub.s32 0, %v325
    %v327 = vrot.slane %v322, %v326
    %v345 = vunpack.c.l.b16 %v306
    %v346 = vunpack.c.l.b16 %v307
    %v347 = vunpack.c.l.b16 %v308
    %v348 = vunpack.c.l.b16 %v309
    %v349 = vunpack.c.l.b16 %v310
    %v350 = vunpack.c.l.b16 %v311
    %v351 = vunpack.c.l.b16 %v312
    %v352 = vunpack.c.l.b16 %v313
    %v353 = vunpack.c.l.b16 %v314
    %v354 = vunpack.c.l.b16 %v315
    %v355 = vunpack.c.l.b16 %v316
    %v356 = vunpack.c.l.b16 %v317
    %v357 = vunpack.c.l.b16 %v318
    %v358 = vunpack.c.l.b16 %v319
    %v359 = vunpack.c.l.b16 %v320
    %v360 = vunpack.c.l.b16 %v321
    %v361 = vpack.c.b16 %v346, %v345
    %v362 = vpack.c.b16 %v348, %v347
    %v363 = vpack.c.b16 %v350, %v349
    %v364 = vpack.c.b16 %v352, %v351
    %v365 = vpack.c.b16 %v354, %v353
    %v366 = vpack.c.b16 %v356, %v355
    %v367 = vpack.c.b16 %v358, %v357
    %v368 = vpack.c.b16 %v360, %v359
    %377 = vmatprep.subr.bf16.mxu0 0
    %378 = vmatpush1.bf16.msra.mxu0 %v361
    %379 = vmatprep.subr.bf16.mxu0 0
    %380 = vmatpush1.bf16.msra.mxu0 %v362
    %381 = vmatprep.subr.bf16.mxu0 0
    %382 = vmatpush1.bf16.msra.mxu0 %v363
    %383 = vmatprep.subr.bf16.mxu0 0
    %384 = vmatpush1.bf16.msra.mxu0 %v364
    %385 = vmatprep.subr.bf16.mxu0 0
    %386 = vmatpush1.bf16.msra.mxu0 %v365
    %387 = vmatprep.subr.bf16.mxu0 0
    %388 = vmatpush1.bf16.msra.mxu0 %v366
    %389 = vmatprep.subr.bf16.mxu0 0
    %390 = vmatpush1.bf16.msra.mxu0 %v367
    %391 = vmatprep.subr.bf16.mxu0 0
    %392 = vmatpush1.bf16.msra.mxu0 %v368
    %393 = vmatprep.subr.bf16.mxu0 0
    %394 = vmatpush1.bf16.msra.mxu0 0
    %395 = vmatprep.subr.bf16.mxu0 0
    %396 = vmatpush1.bf16.msra.mxu0 0
    %397 = vmatprep.subr.bf16.mxu0 0
    %398 = vmatpush1.bf16.msra.mxu0 0
    %399 = vmatprep.subr.bf16.mxu0 0
    %400 = vmatpush1.bf16.msra.mxu0 0
    %401 = vmatprep.subr.bf16.mxu0 0
    %402 = vmatpush1.bf16.msra.mxu0 0
    %403 = vmatprep.subr.bf16.mxu0 0
    %404 = vmatpush1.bf16.msra.mxu0 0
    %405 = vmatprep.subr.bf16.mxu0 0
    %406 = vmatpush1.bf16.msra.mxu0 0
    %407 = vmatprep.subr.bf16.mxu0 0
    %408 = vmatpush1.bf16.msra.mxu0 0
    %409 = vmatprep.mubr.bf16.mxu0 0
    %410 = vmatmul.mubr.bf16.gmra.mrb[0].mxu0 %v305
    %v411 = vpop.f32.mrb[0].mxu0
    %v412 = vadd.f32 %v327, %v411
    %v413 = vpop.f32.mrb[0].mxu0
    %v414 = vpop.f32.mrb[0].mxu0
    %v415 = vadd.f32 %v327, %v414
    %v416 = vpop.f32.mrb[0].mxu0
    %417 = vdwg.mxu0
    %v418 = vmax.f32 %v412, 0.0
    %v419 = vmax.f32 %v415, 0.0
    %v420 = vpack.c.bf16 %v419, %v418
    %v421 = vld [vmem:[#allocation7] sm:$0xf]
    %v422 = vld [vmem:[#allocation7 + $0x4] sm:$0xf]
    %v423 = vld [vmem:[#allocation7 + $0x8] sm:$0xf]
    %v424 = vld [vmem:[#allocation7 + $0xc] sm:$0xf]
    %v425 = vld [vmem:[#allocation7 + $0x10] sm:$0xf]
    %v426 = vld [vmem:[#allocation7 + $0x14] sm:$0xf]
    %v427 = vld [vmem:[#allocation7 + $0x18] sm:$0xf]
    %v428 = vld [vmem:[#allocation7 + $0x1c] sm:$0xf]
    %v429 = vld [vmem:[#allocation7 + $0x20] sm:$0xf]
    %v430 = vld [vmem:[#allocation7 + $0x24] sm:$0xf]
    %v431 = vld [vmem:[#allocation7 + $0x28] sm:$0xf]
    %v432 = vld [vmem:[#allocation7 + $0x2c] sm:$0xf]
    %v433 = vld [vmem:[#allocation7 + $0x30] sm:$0xf]
    %v434 = vld [vmem:[#allocation7 + $0x34] sm:$0xf]
    %v435 = vld [vmem:[#allocation7 + $0x38] sm:$0xf]
    %v436 = vld [vmem:[#allocation7 + $0x3c] sm:$0xf]
    %v437 = vld [vmem:[%s6] sm:$0x1]
    %v439 = vlaneseq
    %v440 = vshrl.u32 %v439, 7
    %v441 = vsub.s32 0, %v440
    %v442 = vrot.slane %v437, %v441
    %v460 = vunpack.c.l.b16 %v421
    %v461 = vunpack.c.l.b16 %v422
    %v462 = vunpack.c.l.b16 %v423
    %v463 = vunpack.c.l.b16 %v424
    %v464 = vunpack.c.l.b16 %v425
    %v465 = vunpack.c.l.b16 %v426
    %v466 = vunpack.c.l.b16 %v427
    %v467 = vunpack.c.l.b16 %v428
    %v468 = vunpack.c.l.b16 %v429
    %v469 = vunpack.c.l.b16 %v430
    %v470 = vunpack.c.l.b16 %v431
    %v471 = vunpack.c.l.b16 %v432
    %v472 = vunpack.c.l.b16 %v433
    %v473 = vunpack.c.l.b16 %v434
    %v474 = vunpack.c.l.b16 %v435
    %v475 = vunpack.c.l.b16 %v436
    %v476 = vpack.c.b16 %v461, %v460
    %v477 = vpack.c.b16 %v463, %v462
    %v478 = vpack.c.b16 %v465, %v464
    %v479 = vpack.c.b16 %v467, %v466
    %v480 = vpack.c.b16 %v469, %v468
    %v481 = vpack.c.b16 %v471, %v470
    %v482 = vpack.c.b16 %v473, %v472
    %v483 = vpack.c.b16 %v475, %v474
    %492 = vmatprep.subr.bf16.mxu0 0
    %493 = vmatpush1.bf16.msra.mxu0 %v476
    %494 = vmatprep.subr.bf16.mxu0 0
    %495 = vmatpush1.bf16.msra.mxu0 %v477
    %496 = vmatprep.subr.bf16.mxu0 0
    %497 = vmatpush1.bf16.msra.mxu0 %v478
    %498 = vmatprep.subr.bf16.mxu0 0
    %499 = vmatpush1.bf16.msra.mxu0 %v479
    %500 = vmatprep.subr.bf16.mxu0 0
    %501 = vmatpush1.bf16.msra.mxu0 %v480
    %502 = vmatprep.subr.bf16.mxu0 0
    %503 = vmatpush1.bf16.msra.mxu0 %v481
    %504 = vmatprep.subr.bf16.mxu0 0
    %505 = vmatpush1.bf16.msra.mxu0 %v482
    %506 = vmatprep.subr.bf16.mxu0 0
    %507 = vmatpush1.bf16.msra.mxu0 %v483
    %508 = vmatprep.subr.bf16.mxu0 0
    %509 = vmatpush1.bf16.msra.mxu0 0
    %510 = vmatprep.subr.bf16.mxu0 0
    %511 = vmatpush1.bf16.msra.mxu0 0
    %512 = vmatprep.subr.bf16.mxu0 0
    %513 = vmatpush1.bf16.msra.mxu0 0
    %514 = vmatprep.subr.bf16.mxu0 0
    %515 = vmatpush1.bf16.msra.mxu0 0
    %516 = vmatprep.subr.bf16.mxu0 0
    %517 = vmatpush1.bf16.msra.mxu0 0
    %518 = vmatprep.subr.bf16.mxu0 0
    %519 = vmatpush1.bf16.msra.mxu0 0
    %520 = vmatprep.subr.bf16.mxu0 0
    %521 = vmatpush1.bf16.msra.mxu0 0
    %522 = vmatprep.subr.bf16.mxu0 0
    %523 = vmatpush1.bf16.msra.mxu0 0
    %524 = vmatprep.mubr.bf16.mxu0 0
    %525 = vmatmul.mubr.bf16.gmra.mrb[0].mxu0 %v420
    %v526 = vpop.f32.mrb[0].mxu0
    %v527 = vadd.f32 %v442, %v526
    %v528 = vpop.f32.mrb[0].mxu0
    %v529 = vpop.f32.mrb[0].mxu0
    %v530 = vadd.f32 %v442, %v529
    %v531 = vpop.f32.mrb[0].mxu0
    %532 = vdwg.mxu0
    %533 = vmax.xlane.f32.xlu0 %v527
    %v534 = vpop.xlane.xlu0 %533
    %535 = vmax.xlane.f32.xlu0 %v530
    %v536 = vpop.xlane.xlu0 %535
    %v537 = vsub.f32 %v527, %v534
    %v538 = vsub.f32 %v530, %v536
    %v539 = vmul.f32 %v537, 1.442695
    %v540 = vpow.pop %v539
    %v541 = vmul.f32 %v538, 1.442695
    %v542 = vpow.pop %v541
    %543 = vadd.xlane.f32.xlu0 %v540
    %v544 = vpop.xlane.xlu0 %543
    %545 = vadd.xlane.f32.xlu0 %v542
    %v546 = vpop.xlane.xlu0 %545
    %v547 = vlog2.pop %v544
    %v548 = vmul.f32 %v547, 0.6931472
    %v549 = vlog2.pop %v546
    %v550 = vmul.f32 %v549, 0.6931472
    %v551 = vsub.f32 %v537, %v548
    %v552 = vsub.f32 %v538, %v550
    %553 = vst [vmem:[#allocation8] sm:$0xff] %v551
    %554 = vst [vmem:[#allocation8 + $0x8] sm:$0xff] %v552
    // Predicated region
    $region42: #{model_e_forward.1} parent=1 // pred_check
      _
    $region43: #{model_e_forward.1} parent=1 // pred_check_branch
      %556 = sbr.rel (0) target = $region45
    $region44: #{model_e_forward.1} parent=1 // pred_region
      %s558 = ssub.s32 256, 32
      %559 = vsyncadd [#allocation4], %s558
      %s560 = sshll.u32 [#allocation8], 4
      %s561 = int_to_ptr.vmem [resolvable:$true] %s560
      %566 = dma.vmem_to_hbm [thread:$0]  %s561, 32, %s7, [#allocation4], 32, 32, 2
    $region45: #{model_e_forward.1} parent=1 // pred_fallthru
      _
    // Predicated region
    $region46: #{model_e_forward.1} parent=1 // pred_check
      _
    $region47: #{model_e_forward.1} parent=1 // pred_check_branch
      %568 = sbr.rel (0) target = $region49
    $region48: #{model_e_forward.1} parent=1 // pred_region
      %569 = dma.done [#allocation4], 256
    $region49: #{model_e_forward.1} parent=1 // pred_fallthru
      _
    %570 = vsyncpa [#allocation3], 1
    %571 = vsyncpa [#allocation6], 1
    %572 = vsyncpa [#allocation4], 1

</llo_original>
